<compile_context>
chip_gen: v7x
topology: tpu7x:2x2x1
jax: 0.10.0
libtpu: 0.0.40
codegen_flags: <defaults>
</compile_context>

<pallas_src>
import jax
import jax.numpy as jnp
from jax import lax
from jax.experimental import pallas as pl
from jax.experimental.pallas import tpu as pltpu

EPS = 1e-5  # nn.LayerNorm default

# Below this many total elements the XLA fusion beats a pallas_call launch.
_FALLBACK_ELEMS = 128 * 1024


def _round_up(x, m):
    return ((x + m - 1) // m) * m


def _round_down(x, m):
    return (x // m) * m


def _add_norm_kernel(x_ref, y_ref, gb_ref, o_ref):
    # x_ref, y_ref, o_ref: (tile_rows, d_model); gb_ref: (2, d_model) = [gamma; beta]
    s = x_ref[...].astype(jnp.float32) + y_ref[...].astype(jnp.float32)
    mean = jnp.mean(s, axis=-1, keepdims=True)
    centered = s - mean
    var = jnp.mean(centered * centered, axis=-1, keepdims=True)
    inv = lax.rsqrt(var + EPS)
    gamma = gb_ref[0:1, :].astype(jnp.float32)
    beta = gb_ref[1:2, :].astype(jnp.float32)
    o_ref[...] = (centered * inv * gamma + beta).astype(o_ref.dtype)


def _vmem_capacity_bytes():
    # NOTE: assumed to be per-TensorCore VMEM (64 MiB on v7x, 128 MiB v5e/v6e).
    # We budget conservatively (0.75x, 96 MiB cap, 2 MiB headroom, 1024-row tile
    # cap) so a per-chip report on v7x would still not overflow per-TC VMEM.
    try:
        return int(pltpu.get_tpu_info().vmem_capacity_bytes)
    except Exception:
        # Conservative fallback (v7x-sized VMEM).
        return 64 * 1024 * 1024


def _select_tile_rows_and_vmem(rows, d_model, itemsize, user_tile=None):
    """Pick a balanced, VMEM-budget-respecting row tile and scoped VMEM limit."""
    # Sublane alignment: 8 rows for 32-bit, 16 for bf16, 32 for 8-bit dtypes.
    row_align = max(8, 32 // itemsize)

    vmem_cap = _vmem_capacity_bytes()
    # Scoped limit: ~75% of physical VMEM (48 MiB on v7x, 96 MiB on v5e/v6e).
    scoped_limit = min(int(vmem_cap * 0.75), 96 * 1024 * 1024)

    # Streaming working set per row: (2 inputs + 1 output) x 2 pipeline buffers,
    # plus ~1 live f32 temporary per element (Mosaic fuses the elementwise chain).
    bytes_per_row = d_model * (6 * itemsize + 4)
    headroom = 2 * 1024 * 1024
    usable = max(scoped_limit - headroom, bytes_per_row * row_align)
    max_tile = _round_down(usable // bytes_per_row, row_align)
    # 512-1024 rows already sit at ~85% of the HBM roofline on all generations;
    # capping also keeps the working set small on v5e's 16 MiB default scope.
    max_tile = max(row_align, min(max_tile, 1024))

    if user_tile is not None:
        # Shrink an oversized user tile to fit the budget rather than OOMing.
        user_tile = max(row_align, _round_down(int(user_tile), row_align))
        max_tile = min(max_tile, user_tile)

    if rows <= 2 * row_align:
        # Tiny input: single full-extent block (allowed by the (8,128) rule).
        tile_rows = rows
    elif rows <= max_tile:
        # Still split into 2 balanced steps so both v7x TCs get work.
        tile_rows = max(row_align, _round_up(pl.cdiv(rows, 2), row_align))
    else:
        # Target an even number of balanced steps (megacore load balance).
        n_steps = pl.cdiv(rows, max_tile)
        if n_steps % 2:
            n_steps += 1
        tile_rows = max(row_align, _round_up(pl.cdiv(rows, n_steps), row_align))
        tile_rows = min(tile_rows, max_tile)

    return tile_rows, scoped_limit, row_align


def _reference(x, y, gamma, beta):
    s = (x + y).astype(jnp.float32)
    mean = jnp.mean(s, axis=-1, keepdims=True)
    var = jnp.mean((s - mean) ** 2, axis=-1, keepdims=True)
    return ((s - mean) / jnp.sqrt(var + EPS)) * gamma + beta


def add_norm(x, sublayer_output, gamma, beta, *, tile_rows=None, force_pallas=False):
    """layer_norm(x + sublayer_output) with per-feature affine params (gamma, beta)."""
    assert x.shape == sublayer_output.shape
    d_model = x.shape[-1]
    assert gamma.shape == (d_model,) and beta.shape == (d_model,)

    orig_shape = x.shape
    rows = 1
    for dim in orig_shape[:-1]:
        rows *= dim

    # Small-input fast path: launch + DMA setup dominates, XLA fusion wins.
    if not force_pallas and rows * d_model <= _FALLBACK_ELEMS:
        return _reference(x, sublayer_output, gamma, beta).astype(x.dtype)

    itemsize = jnp.dtype(x.dtype).itemsize
    tile_rows, vmem_limit, _ = _select_tile_rows_and_vmem(
        rows, d_model, itemsize, user_tile=tile_rows
    )

    x2 = x.reshape(rows, d_model)
    y2 = sublayer_output.reshape(rows, d_model)
    gb = jnp.stack([gamma, beta], axis=0)  # (2, d_model), resident in VMEM

    grid = (pl.cdiv(rows, tile_rows),)

    out = pl.pallas_call(
        _add_norm_kernel,
        out_shape=jax.ShapeDtypeStruct((rows, d_model), x.dtype),
        grid_spec=pltpu.PrefetchScalarGridSpec(
            num_scalar_prefetch=0,
            grid=grid,
            in_specs=[
                pl.BlockSpec((tile_rows, d_model), lambda i: (i, 0)),
                pl.BlockSpec((tile_rows, d_model), lambda i: (i, 0)),
                pl.BlockSpec((2, d_model), lambda i: (0, 0)),
            ],
            out_specs=pl.BlockSpec((tile_rows, d_model), lambda i: (i, 0)),
        ),
        compiler_params=pltpu.CompilerParams(
            # Independent row blocks: shard grid steps across TensorCores on v7x
            # (step count is kept even & balanced by _select_tile_rows_and_vmem).
            dimension_semantics=("parallel",),
            vmem_limit_bytes=int(vmem_limit),
        ),
    )(x2, y2, gb)

    return out.reshape(orig_shape)


if __name__ == "__main__":
    key = jax.random.PRNGKey(0)
    k1, k2, k3, k4, k5, k6 = jax.random.split(key, 6)

    # --- Shape 1: module's nominal small shape; force the Pallas path. ---
    batch, seq, d_model = 2, 8, 32
    x = jax.random.normal(k1, (batch, seq, d_model), dtype=jnp.float32)
    sub = jax.random.normal(k2, (batch, seq, d_model), dtype=jnp.float32)
    gamma = 1.0 + 0.1 * jax.random.normal(k3, (d_model,), dtype=jnp.float32)
    beta = 0.1 * jax.random.normal(k4, (d_model,), dtype=jnp.float32)

    out = jax.block_until_ready(add_norm(x, sub, gamma, beta, force_pallas=True))
    ref = _reference(x, sub, gamma, beta)
    assert out.shape == (batch, seq, d_model)
    assert jnp.allclose(out, ref, atol=2e-5, rtol=2e-5), "pallas mismatch vs reference"

    # Auto path (small-input XLA fallback) must agree too.
    out_auto = jax.block_until_ready(add_norm(x, sub, gamma, beta))
    assert jnp.allclose(out_auto, ref, atol=2e-5, rtol=2e-5), "fallback mismatch"

    # --- Shape 2: lane-aligned d_model, multi-step grid (resident gamma/beta). ---
    b2, s2, d2 = 2, 64, 256
    x2 = jax.random.normal(k5, (b2, s2, d2), dtype=jnp.float32)
    sub2 = jax.random.normal(k6, (b2, s2, d2), dtype=jnp.float32)
    gamma2 = jnp.ones((d2,), dtype=jnp.float32) * 1.05
    beta2 = jnp.full((d2,), 0.02, dtype=jnp.float32)

    out2 = jax.block_until_ready(add_norm(x2, sub2, gamma2, beta2, force_pallas=True))
    ref2 = _reference(x2, sub2, gamma2, beta2)
    assert jnp.allclose(out2, ref2, atol=2e-5, rtol=2e-5), "pallas mismatch (aligned)"

    print("KERNEL_OK")
</pallas_src>

<mosaic_0001>
module attributes {stable_mosaic.version = 11 : i64} {
  func.func @_add_norm_kernel(%arg0: i32, %arg1: memref<16x32xf32, #tpu.memory_space<vmem>>, %arg2: memref<16x32xf32, #tpu.memory_space<vmem>>, %arg3: memref<2x32xf32, #tpu.memory_space<vmem>>, %arg4: memref<16x32xf32, #tpu.memory_space<vmem>>) attributes {dimension_semantics = [#tpu.dimension_semantics<parallel>], iteration_bounds = array<i64: 1>, scalar_prefetch = 0 : i64, scratch_operands = 0 : i64, tpu.core_type = #tpu.core_type<tc>, window_params = [{transform_indices = @transform_0, window_bounds = array<i64: 16, 32>}, {transform_indices = @transform_1, window_bounds = array<i64: 16, 32>}, {pipeline_mode = #tpu.pipeline_mode<synchronous>, transform_indices = @transform_2, window_bounds = array<i64: 2, 32>}, {transform_indices = @transform_3, window_bounds = array<i64: 16, 32>}]} {
    %c0 = arith.constant 0 : index
    %c0_0 = arith.constant 0 : index
    %0 = vector.load %arg1[%c0, %c0_0] : memref<16x32xf32, #tpu.memory_space<vmem>>, vector<16x32xf32>
    %c0_1 = arith.constant 0 : index
    %c0_2 = arith.constant 0 : index
    %1 = vector.load %arg2[%c0_1, %c0_2] : memref<16x32xf32, #tpu.memory_space<vmem>>, vector<16x32xf32>
    %2 = arith.addf %0, %1 : vector<16x32xf32>
    %cst = arith.constant dense<0.000000e+00> : vector<16xf32>
    %3 = vector.multi_reduction <add>, %2, %cst [1] : vector<16x32xf32> to vector<16xf32>
    %4 = vector.shape_cast %3 : vector<16xf32> to vector<16x1xf32>
    %cst_3 = arith.constant 3.200000e+01 : f32
    %5 = vector.broadcast %cst_3 : f32 to vector<16x1xf32>
    %6 = arith.divf %4, %5 : vector<16x1xf32>
    %7 = vector.broadcast %6 : vector<16x1xf32> to vector<16x32xf32>
    %8 = arith.subf %2, %7 : vector<16x32xf32>
    %9 = arith.mulf %8, %8 : vector<16x32xf32>
    %cst_4 = arith.constant dense<0.000000e+00> : vector<16xf32>
    %10 = vector.multi_reduction <add>, %9, %cst_4 [1] : vector<16x32xf32> to vector<16xf32>
    %11 = vector.shape_cast %10 : vector<16xf32> to vector<16x1xf32>
    %cst_5 = arith.constant 3.200000e+01 : f32
    %12 = vector.broadcast %cst_5 : f32 to vector<16x1xf32>
    %13 = arith.divf %11, %12 : vector<16x1xf32>
    %cst_6 = arith.constant 9.99999974E-6 : f32
    %14 = vector.broadcast %cst_6 : f32 to vector<16x1xf32>
    %15 = arith.addf %13, %14 : vector<16x1xf32>
    %16 = math.rsqrt %15 : vector<16x1xf32>
    %c0_7 = arith.constant 0 : index
    %c0_8 = arith.constant 0 : index
    %17 = vector.load %arg3[%c0_7, %c0_8] : memref<2x32xf32, #tpu.memory_space<vmem>>, vector<1x32xf32>
    %c1 = arith.constant 1 : index
    %c0_9 = arith.constant 0 : index
    %18 = vector.load %arg3[%c1, %c0_9] : memref<2x32xf32, #tpu.memory_space<vmem>>, vector<1x32xf32>
    %19 = vector.broadcast %16 : vector<16x1xf32> to vector<16x32xf32>
    %20 = arith.mulf %8, %19 : vector<16x32xf32>
    %21 = vector.broadcast %17 : vector<1x32xf32> to vector<16x32xf32>
    %22 = arith.mulf %20, %21 : vector<16x32xf32>
    %23 = vector.broadcast %18 : vector<1x32xf32> to vector<16x32xf32>
    %24 = arith.addf %22, %23 : vector<16x32xf32>
    %c0_10 = arith.constant 0 : index
    %c0_11 = arith.constant 0 : index
    %25 = vector.load %arg4[%c0_10, %c0_11] : memref<16x32xf32, #tpu.memory_space<vmem>>, vector<16x32xf32>
    tpu.vector_store %arg4[%c0_10, %c0_11], %24 {strides = array<i32>} : memref<16x32xf32, #tpu.memory_space<vmem>>, vector<16x32xf32>,
    return
  }
  func.func @transform_0(%arg0: i32) -> (i32, i32) {
    %c0_i32 = arith.constant 0 : i32
    %c0_i32_0 = arith.constant 0 : i32
    return %arg0, %c0_i32 : i32, i32
  }
  func.func @transform_1(%arg0: i32) -> (i32, i32) {
    %c0_i32 = arith.constant 0 : i32
    %c0_i32_0 = arith.constant 0 : i32
    return %arg0, %c0_i32 : i32, i32
  }
  func.func @transform_2(%arg0: i32) -> (i32, i32) {
    %c0_i32 = arith.constant 0 : i32
    %c0_i32_0 = arith.constant 0 : i32
    %c0_i32_1 = arith.constant 0 : i32
    return %c0_i32, %c0_i32_0 : i32, i32
  }
  func.func @transform_3(%arg0: i32) -> (i32, i32) {
    %c0_i32 = arith.constant 0 : i32
    %c0_i32_0 = arith.constant 0 : i32
    return %arg0, %c0_i32 : i32, i32
  }
}

</mosaic_0001>

<llo_original>
// kernel: tpu_custom_call.1
$region0: #{tpu_custom_call.1}
  #allocation0 [shape = 'u32[]', space=smem, size = 0x4, offset = 0x4, fixed_abs, tag = 'smem constant byte address 0x4 - core index']
  #allocation1 [shape = 'u32[144,128]{1,0:T(1,128)}', space=vmem, size = 0x12000, scoped, tag = 'internal scratch']
  %s0 = inlined_call_operand.hbm [shape: f32[16,32], index: 0, kind: input, shape index: {}]
  %s1 = inlined_call_operand.hbm [shape: f32[16,32], index: 1, kind: input, shape index: {}]
  %s2 = inlined_call_operand.vmem [shape: f32[2,32], index: 2, kind: input, shape index: {}]
  %s3 = inlined_call_operand.hbm [shape: f32[16,32], index: 3, kind: output, shape index: {}]
  %s4 = sld [smem:[#allocation0]]
  $region30: #{tpu_custom_call.1} parent=0
    _
  %s6 = ssub.s32 1, %s4
  %s7 = scalar_select 0, %s6, %s4
  $region1: #{tpu_custom_call.1} parent=0
    #allocation2 [shape = 'u8[8192]{0}', space=vmem, size = 0x2000, scoped, tag = 'input window, operand 0, single buffered']
    #allocation3 [shape = 's32[1]{0}', space=sflag, size = 0x4, scoped, tag = 'scoped memory for tpu_custom_call.1']
    #allocation4 [shape = 's32[1]{0}', space=sflag, size = 0x4, scoped, tag = 'scoped memory for tpu_custom_call.1']
    #allocation5 [shape = 'u8[8192]{0}', space=vmem, size = 0x2000, scoped, tag = 'input window, operand 1, single buffered']
    #allocation6 [shape = 's32[1]{0}', space=sflag, size = 0x4, scoped, tag = 'scoped memory for tpu_custom_call.1']
    #allocation7 [shape = 'u8[8192]{0}', space=vmem, size = 0x2000, scoped, tag = 'output window, operand 0, single buffered']
    %8 = vsyncpa [#allocation3], 0
    %9 = vsyncpa [#allocation6], 0
    %10 = vsyncpa [#allocation4], 0
    // Predicated region
    $region2: #{tpu_custom_call.1} parent=1 // pred_check
      _
    $region3: #{tpu_custom_call.1} parent=1 // pred_check_branch
      %12 = sbr.rel (0) target = $region5
    $region4: #{tpu_custom_call.1} parent=1 // pred_region
      %s14 = ssub.s32 256, 256
      %15 = vsyncadd [#allocation3], %s14
      %s16 = sshll.u32 [#allocation2], 4
      %s17 = int_to_ptr.vmem [resolvable:$true] %s16
      %22 = dma.hbm_to_vmem [thread:$0]  %s0, 256, %s17, [#allocation3], 128, 128, 8
    $region5: #{tpu_custom_call.1} parent=1 // pred_fallthru
      _
    // Predicated region
    $region6: #{tpu_custom_call.1} parent=1 // pred_check
      _
    $region7: #{tpu_custom_call.1} parent=1 // pred_check_branch
      %24 = sbr.rel (0) target = $region9
    $region8: #{tpu_custom_call.1} parent=1 // pred_region
      %s26 = ssub.s32 256, 256
      %27 = vsyncadd [#allocation6], %s26
      %s28 = sshll.u32 [#allocation5], 4
      %s29 = int_to_ptr.vmem [resolvable:$true] %s28
      %34 = dma.hbm_to_vmem [thread:$0]  %s1, 256, %s29, [#allocation6], 128, 128, 8
    $region9: #{tpu_custom_call.1} parent=1 // pred_fallthru
      _
    // Predicated region
    $region10: #{tpu_custom_call.1} parent=1 // pred_check
      _
    $region11: #{tpu_custom_call.1} parent=1 // pred_check_branch
      %36 = sbr.rel (0) target = $region13
    $region12: #{tpu_custom_call.1} parent=1 // pred_region
      _
    $region13: #{tpu_custom_call.1} parent=1 // pred_fallthru
      _
    // Predicated region
    $region14: #{tpu_custom_call.1} parent=1 // pred_check
      _
    $region15: #{tpu_custom_call.1} parent=1 // pred_check_branch
      %38 = sbr.rel (0) target = $region17
    $region16: #{tpu_custom_call.1} parent=1 // pred_region
      %39 = dma.done [#allocation3], 256
    $region17: #{tpu_custom_call.1} parent=1 // pred_fallthru
      _
    // Predicated region
    $region18: #{tpu_custom_call.1} parent=1 // pred_check
      _
    $region19: #{tpu_custom_call.1} parent=1 // pred_check_branch
      %41 = sbr.rel (0) target = $region21
    $region20: #{tpu_custom_call.1} parent=1 // pred_region
      %42 = dma.done [#allocation6], 256
    $region21: #{tpu_custom_call.1} parent=1 // pred_fallthru
      _
    %v43 = vld [vmem:[#allocation2] sm:$0xff]
    %v44 = vld [vmem:[#allocation2 + $0x8] sm:$0xff]
    %v45 = vld [vmem:[#allocation5] sm:$0xff]
    %v46 = vld [vmem:[#allocation5 + $0x8] sm:$0xff]
    %v47 = vadd.f32 %v43, %v45
    %v48 = vadd.f32 %v44, %v46
    %vm49 = vcmask 261120
    %v50 = vsel %vm49, %v47, 0.0
    %51 = vadd.xlane.f32.xlu0 %v50
    %v52 = vpop.xlane.xlu0 %51
    %v53 = vsel %vm49, %v48, 0.0
    %54 = vadd.xlane.f32.xlu0 %v53
    %v55 = vpop.xlane.xlu0 %54
    %v56 = vrcp.pop 32.0
    %v57 = vmul.f32 %v52, %v56
    %v58 = vmul.f32 %v55, %v56
    %v59 = vsub.f32 %v47, %v57
    %v60 = vsub.f32 %v48, %v58
    %v61 = vmul.f32 %v59, %v59
    %v62 = vmul.f32 %v60, %v60
    %v63 = vsel %vm49, %v61, 0.0
    %64 = vadd.xlane.f32.xlu0 %v63
    %v65 = vpop.xlane.xlu0 %64
    %v66 = vsel %vm49, %v62, 0.0
    %67 = vadd.xlane.f32.xlu0 %v66
    %v68 = vpop.xlane.xlu0 %67
    %v69 = vmul.f32 %v65, %v56
    %v70 = vmul.f32 %v68, %v56
    %v71 = vadd.f32 %v69, 1e-05
    %v72 = vadd.f32 %v70, 1e-05
    %v73 = vrsqrt.pop %v71
    %v74 = vrsqrt.pop %v72
    %v75 = vld [vmem:[%s2] sm:$0x1]
    %v76 = vld [vmem:[%s2 + $0x1] sm:$0x1]
    %v77 = vmul.f32 %v59, %v73
    %v78 = vmul.f32 %v60, %v74
    %v79 = vlaneseq
    %v80 = vshrl.u32 %v79, 7
    %v81 = vsub.s32 0, %v80
    %v82 = vrot.slane %v75, %v81
    %v83 = vmul.f32 %v77, %v82
    %v84 = vmul.f32 %v78, %v82
    %v85 = vlaneseq
    %v86 = vshrl.u32 %v85, 7
    %v87 = vsub.s32 0, %v86
    %v88 = vrot.slane %v76, %v87
    %v89 = vadd.f32 %v83, %v88
    %v90 = vadd.f32 %v84, %v88
    %91 = vst.msk [vmem:[#allocation7] sm:$0xff] %vm49, %v89
    %92 = vst.msk [vmem:[#allocation7 + $0x8] sm:$0xff] %vm49, %v90
    // Predicated region
    $region22: #{tpu_custom_call.1} parent=1 // pred_check
      _
    $region23: #{tpu_custom_call.1} parent=1 // pred_check_branch
      %94 = sbr.rel (0) target = $region25
    $region24: #{tpu_custom_call.1} parent=1 // pred_region
      %s96 = ssub.s32 256, 256
      %97 = vsyncadd [#allocation4], %s96
      %s98 = sshll.u32 [#allocation7], 4
      %s99 = int_to_ptr.vmem [resolvable:$true] %s98
      %104 = dma.vmem_to_hbm [thread:$0]  %s99, 256, %s3, [#allocation4], 128, 128, 8
    $region25: #{tpu_custom_call.1} parent=1 // pred_fallthru
      _
    // Predicated region
    $region26: #{tpu_custom_call.1} parent=1 // pred_check
      _
    $region27: #{tpu_custom_call.1} parent=1 // pred_check_branch
      %106 = sbr.rel (0) target = $region29
    $region28: #{tpu_custom_call.1} parent=1 // pred_region
      %107 = dma.done [#allocation4], 256
    $region29: #{tpu_custom_call.1} parent=1 // pred_fallthru
      _
    %108 = vsyncpa [#allocation3], 1
    %109 = vsyncpa [#allocation6], 1
    %110 = vsyncpa [#allocation4], 1

</llo_original>
